<compile_context>
chip_gen: v5e
topology: v5e:2x2
jax: 0.10.0
libtpu: 0.0.40
codegen_flags: <defaults>
</compile_context>

<pallas_src>
import functools

import jax
import jax.numpy as jnp
from jax.experimental import pallas as pl
from jax.experimental.pallas import tpu as pltpu

_LANES = 128
_SUBLANES = 8
_MAX_BLOCK_ROWS = 4096          # 4096 x 128 x 4B = 2 MiB per f32 input block/buffer


def _loss_kernel(fake_ref, real_ref, out_ref, *, mode, block_rows, n_inner,
                 n_rows, needs_mask, inv_n):
    p = pl.program_id(0)   # "parallel" axis (megacore split on v7x)
    i = pl.program_id(1)   # "arbitrary" streaming-reduction axis

    @pl.when(i == 0)
    def _init():
        out_ref[...] = jnp.zeros_like(out_ref)

    diff = fake_ref[...].astype(jnp.float32) - real_ref[...].astype(jnp.float32)
    if mode == "mse":
        contrib = diff * diff
    else:  # "l1"
        contrib = jnp.abs(diff)

    if needs_mask:
        # Zero out rows past the true row count (partial / dummy tail blocks).
        block_start = (p * n_inner + i) * block_rows
        row_ids = block_start + jax.lax.broadcasted_iota(
            jnp.int32, (block_rows, _LANES), 0)
        contrib = jnp.where(row_ids < n_rows, contrib, 0.0)

    # Per-(sublane, lane) accumulation: only cheap VPU adds in the hot loop;
    # the expensive cross-lane reduce happens exactly once, outside the kernel.
    partial = contrib.reshape(block_rows // _SUBLANES, _SUBLANES, _LANES).sum(axis=0)
    out_ref[...] += partial.reshape(1, _SUBLANES, _LANES)

    @pl.when(i == n_inner - 1)
    def _finalize():
        out_ref[...] = out_ref[...] * inv_n   # fold the 'mean' into the epilogue


def _pallas_criterion(fakeIm, realIm, mode):
    """sum_p Pallas partials == mean(|fake-real|^p) with criterion semantics."""
    n = fakeIm.size
    flat_f = jnp.ravel(fakeIm)          # keep native dtype; cast to f32 in-kernel
    flat_r = jnp.ravel(realIm)

    tile = _SUBLANES * _LANES
    if n % tile != 0:
        # Rare fallback: pad up to a (8,128)-aligned length; padded zeros add 0
        # to the sum and we still divide by the true n.
        pad = tile - n % tile
        flat_f = jnp.pad(flat_f, (0, pad))
        flat_r = jnp.pad(flat_r, (0, pad))

    rows = flat_f.shape[0] // _LANES            # multiple of 8 by construction
    f2 = flat_f.reshape(rows, _LANES)
    r2 = flat_r.reshape(rows, _LANES)

    block_rows = min(_MAX_BLOCK_ROWS, rows)
    n_blocks = -(-rows // block_rows)
    n_p = 2 if n_blocks >= 2 else 1             # up to 2 TensorCore shards (v7x)
    n_inner = -(-n_blocks // n_p)
    needs_mask = (n_p * n_inner * block_rows) != rows
    max_block = n_blocks - 1
    inv_n = 1.0 / float(n)

    def in_map(p, i):
        blk = p * n_inner + i
        if needs_mask:
            blk = jnp.minimum(blk, max_block)   # dummy tail blocks re-read + mask
        return (blk, 0)

    kernel = functools.partial(
        _loss_kernel, mode=mode, block_rows=block_rows, n_inner=n_inner,
        n_rows=rows, needs_mask=needs_mask, inv_n=inv_n)

    partials = pl.pallas_call(
        kernel,
        out_shape=jax.ShapeDtypeStruct((n_p, _SUBLANES, _LANES), jnp.float32),
        grid_spec=pltpu.PrefetchScalarGridSpec(
            num_scalar_prefetch=0,
            grid=(n_p, n_inner),
            in_specs=[
                pl.BlockSpec((block_rows, _LANES), in_map),
                pl.BlockSpec((block_rows, _LANES), in_map),
            ],
            out_specs=pl.BlockSpec((1, _SUBLANES, _LANES), lambda p, i: (p, 0, 0)),
        ),
        compiler_params=pltpu.CompilerParams(
            dimension_semantics=("parallel", "arbitrary"),
        ),
    )(f2, r2)

    # Partials already carry the 1/n factor; finish the tree-sum in (fused) JAX.
    return jnp.sum(partials)


@functools.partial(jax.jit, static_argnames=("mode",))
def _perceptual_loss(fakeIm, realIm, mode):
    return _pallas_criterion(fakeIm, realIm, mode)


class PerceptualLoss:
    """JAX/Pallas mirror of the PyTorch PerceptualLoss module."""

    def __init__(self):
        self.criterion = None

    def initialize(self, loss):
        # `loss` selects the criterion: "mse" mirrors nn.MSELoss(), "l1" mirrors
        # nn.L1Loss() (both reduction='mean').
        # TODO(synk): arbitrary user-injected torch criterion callables have no
        # generic Pallas equivalent; only the MSE/L1 criteria are kernelized.
        assert loss in ("mse", "l1")
        self.criterion = loss

    def forward(self, fakeIm, realIm):
        assert self.criterion is not None, "call initialize() first"
        assert fakeIm.shape == realIm.shape
        return _perceptual_loss(fakeIm, realIm, self.criterion)

    __call__ = forward


if __name__ == "__main__":
    key = jax.random.PRNGKey(0)
    k1, k2, k3, k4 = jax.random.split(key, 4)

    # Small NCHW images, as in the PyTorch module family.
    fake = jax.random.normal(k1, (2, 4, 16, 16), dtype=jnp.float32)
    real = jax.random.normal(k2, (2, 4, 16, 16), dtype=jnp.float32)

    ploss = PerceptualLoss()
    ploss.initialize("mse")
    loss_mse = ploss(fake, real)
    jax.block_until_ready(loss_mse)
    ref_mse = jnp.mean((fake - real) ** 2)
    assert jnp.allclose(loss_mse, ref_mse, rtol=1e-5, atol=1e-6), (loss_mse, ref_mse)

    ploss.initialize("l1")
    loss_l1 = ploss(fake, real)
    jax.block_until_ready(loss_l1)
    ref_l1 = jnp.mean(jnp.abs(fake - real))
    assert jnp.allclose(loss_l1, ref_l1, rtol=1e-5, atol=1e-6), (loss_l1, ref_l1)

    # Larger ragged case exercising the multi-block / masked / parallel path.
    fake2 = jax.random.normal(k3, (2, 3, 320, 320), dtype=jnp.float32)
    real2 = jax.random.normal(k4, (2, 3, 320, 320), dtype=jnp.float32)
    ploss.initialize("mse")
    loss2 = ploss(fake2, real2)
    jax.block_until_ready(loss2)
    ref2 = jnp.mean((fake2 - real2) ** 2)
    assert jnp.allclose(loss2, ref2, rtol=1e-5, atol=1e-6), (loss2, ref2)

    print("KERNEL_OK")
</pallas_src>

<mosaic_0001>
module attributes {stable_mosaic.version = 11 : i64} {
  func.func @_loss_kernel(%arg0: i32, %arg1: i32, %arg2: memref<16x128xf32, #tpu.memory_space<vmem>>, %arg3: memref<16x128xf32, #tpu.memory_space<vmem>>, %arg4: memref<1x8x128xf32, #tpu.memory_space<vmem>>) attributes {dimension_semantics = [#tpu.dimension_semantics<parallel>, #tpu.dimension_semantics<arbitrary>], iteration_bounds = array<i64: 1, 1>, scalar_prefetch = 0 : i64, scratch_operands = 0 : i64, tpu.core_type = #tpu.core_type<tc>, window_params = [{transform_indices = @transform_0, window_bounds = array<i64: 16, 128>}, {transform_indices = @transform_1, window_bounds = array<i64: 16, 128>}, {transform_indices = @transform_2, window_bounds = array<i64: 1, 8, 128>}]} {
    %c0_i32 = arith.constant 0 : i32
    %0 = arith.cmpi eq, %arg1, %c0_i32 : i32
    %1 = arith.extui %0 : i1 to i32
    %c0_i32_0 = arith.constant 0 : i32
    %2 = arith.cmpi ne, %1, %c0_i32_0 : i32
    scf.if %2 {
      %cst_12 = arith.constant 0.000000e+00 : f32
      %16 = vector.broadcast %cst_12 : f32 to vector<1x8x128xf32>
      %c0_13 = arith.constant 0 : index
      %c0_14 = arith.constant 0 : index
      %c0_15 = arith.constant 0 : index
      %17 = vector.load %arg4[%c0_13, %c0_14, %c0_15] : memref<1x8x128xf32, #tpu.memory_space<vmem>>, vector<1x8x128xf32>
      tpu.vector_store %arg4[%c0_13, %c0_14, %c0_15], %16 {strides = array<i32>} : memref<1x8x128xf32, #tpu.memory_space<vmem>>, vector<1x8x128xf32>,
    } else {
    }
    %c0 = arith.constant 0 : index
    %c0_1 = arith.constant 0 : index
    %3 = vector.load %arg2[%c0, %c0_1] : memref<16x128xf32, #tpu.memory_space<vmem>>, vector<16x128xf32>
    %c0_2 = arith.constant 0 : index
    %c0_3 = arith.constant 0 : index
    %4 = vector.load %arg3[%c0_2, %c0_3] : memref<16x128xf32, #tpu.memory_space<vmem>>, vector<16x128xf32>
    %5 = arith.subf %3, %4 : vector<16x128xf32>
    %6 = arith.mulf %5, %5 : vector<16x128xf32>
    %7 = vector.shape_cast %6 : vector<16x128xf32> to vector<2x8x128xf32>
    %cst = arith.constant dense<0.000000e+00> : vector<8x128xf32>
    %8 = vector.multi_reduction <add>, %7, %cst [0] : vector<2x8x128xf32> to vector<8x128xf32>
    %c0_4 = arith.constant 0 : index
    %c0_5 = arith.constant 0 : index
    %c0_6 = arith.constant 0 : index
    %9 = vector.load %arg4[%c0_4, %c0_5, %c0_6] : memref<1x8x128xf32, #tpu.memory_space<vmem>>, vector<1x8x128xf32>
    %10 = vector.shape_cast %8 : vector<8x128xf32> to vector<1x8x128xf32>
    %11 = arith.addf %9, %10 : vector<1x8x128xf32>
    %c0_7 = arith.constant 0 : index
    %c0_8 = arith.constant 0 : index
    %c0_9 = arith.constant 0 : index
    %12 = vector.load %arg4[%c0_7, %c0_8, %c0_9] : memref<1x8x128xf32, #tpu.memory_space<vmem>>, vector<1x8x128xf32>
    tpu.vector_store %arg4[%c0_7, %c0_8, %c0_9], %11 {strides = array<i32>} : memref<1x8x128xf32, #tpu.memory_space<vmem>>, vector<1x8x128xf32>,
    %c0_i32_10 = arith.constant 0 : i32
    %13 = arith.cmpi eq, %arg1, %c0_i32_10 : i32
    %14 = arith.extui %13 : i1 to i32
    %c0_i32_11 = arith.constant 0 : i32
    %15 = arith.cmpi ne, %14, %c0_i32_11 : i32
    scf.if %15 {
      %c0_12 = arith.constant 0 : index
      %c0_13 = arith.constant 0 : index
      %c0_14 = arith.constant 0 : index
      %16 = vector.load %arg4[%c0_12, %c0_13, %c0_14] : memref<1x8x128xf32, #tpu.memory_space<vmem>>, vector<1x8x128xf32>
      %cst_15 = arith.constant 4.8828125E-4 : f32
      %17 = vector.broadcast %cst_15 : f32 to vector<1x8x128xf32>
      %18 = arith.mulf %16, %17 : vector<1x8x128xf32>
      %c0_16 = arith.constant 0 : index
      %c0_17 = arith.constant 0 : index
      %c0_18 = arith.constant 0 : index
      %19 = vector.load %arg4[%c0_16, %c0_17, %c0_18] : memref<1x8x128xf32, #tpu.memory_space<vmem>>, vector<1x8x128xf32>
      tpu.vector_store %arg4[%c0_16, %c0_17, %c0_18], %18 {strides = array<i32>} : memref<1x8x128xf32, #tpu.memory_space<vmem>>, vector<1x8x128xf32>,
    } else {
    }
    return
  }
  func.func @transform_0(%arg0: i32, %arg1: i32) -> (i32, i32) {
    %c1_i32 = arith.constant 1 : i32
    %0 = arith.muli %arg0, %c1_i32 : i32
    %1 = arith.addi %0, %arg1 : i32
    %c0_i32 = arith.constant 0 : i32
    %c0_i32_0 = arith.constant 0 : i32
    return %1, %c0_i32 : i32, i32
  }
  func.func @transform_1(%arg0: i32, %arg1: i32) -> (i32, i32) {
    %c1_i32 = arith.constant 1 : i32
    %0 = arith.muli %arg0, %c1_i32 : i32
    %1 = arith.addi %0, %arg1 : i32
    %c0_i32 = arith.constant 0 : i32
    %c0_i32_0 = arith.constant 0 : i32
    return %1, %c0_i32 : i32, i32
  }
  func.func @transform_2(%arg0: i32, %arg1: i32) -> (i32, i32, i32) {
    %c0_i32 = arith.constant 0 : i32
    %c0_i32_0 = arith.constant 0 : i32
    %c0_i32_1 = arith.constant 0 : i32
    return %arg0, %c0_i32, %c0_i32_0 : i32, i32, i32
  }
}

</mosaic_0001>

<llo_original>
// kernel: _perceptual_loss.1
$region0: #{_perceptual_loss.1}
  #allocation0 [shape = 'u32[]', space=smem, size = 0x4, offset = 0x4, fixed_abs, tag = 'smem constant byte address 0x4 - core index']
  #allocation1 [shape = 'u32[72,128]{1,0:T(1,128)}', space=vmem, size = 0x9000, scoped, tag = 'internal scratch']
  %s0 = inlined_call_operand.vmem [shape: f32[16,128], index: 0, kind: input, shape index: {}]
  %s1 = inlined_call_operand.vmem [shape: f32[16,128], index: 1, kind: input, shape index: {}]
  %s2 = inlined_call_operand.vmem [shape: f32[1,8,128], index: 2, kind: output, shape index: {}]
  %s3 = sld [smem:[#allocation0]]
  $region26: #{_perceptual_loss.1} parent=0
    _
  %s5 = ssub.s32 1, %s3
  %s6 = scalar_select 0, %s5, %s3
  // Predicated region
  $region2: #{_perceptual_loss.1} parent=0 // pred_check
    _
  $region3: #{_perceptual_loss.1} parent=0 // pred_check_branch
    %8 = sbr.rel (0) target = $region5
  $region4: #{_perceptual_loss.1} parent=0 // pred_region
    %s9 = sadd.s32 0, 0
    %s10 = smul.u32 2, %s9
    %p11 = scmp.lt.s32.totalorder %s10, 1
    %s12 = scalar_select %p11, %s10, 1
    %s13 = smul.addr %s12, 8
    %s14 = scalar_lea.vmem %s0, %s13
    %s15 = sadd.s32 0, 0
    %s16 = smul.u32 2, %s15
  $region5: #{_perceptual_loss.1} parent=0 // pred_fallthru
    _
  // Predicated region
  $region6: #{_perceptual_loss.1} parent=0 // pred_check
    _
  $region7: #{_perceptual_loss.1} parent=0 // pred_check_branch
    %18 = sbr.rel (0) target = $region9
  $region8: #{_perceptual_loss.1} parent=0 // pred_region
    %s19 = sadd.s32 0, 0
    %s20 = smul.u32 2, %s19
    %p21 = scmp.lt.s32.totalorder %s20, 1
    %s22 = scalar_select %p21, %s20, 1
    %s23 = smul.addr %s22, 8
    %s24 = scalar_lea.vmem %s1, %s23
    %s25 = sadd.s32 0, 0
    %s26 = smul.u32 2, %s25
  $region9: #{_perceptual_loss.1} parent=0 // pred_fallthru
    _
  %s27 = sadd.s32 0, 0
  %s28 = smul.u32 2, %s27
  %p29 = scmp.lt.s32.totalorder %s28, 1
  %s30 = scalar_select %p29, %s28, 1
  %s31 = smul.addr %s30, 8
  %s32 = scalar_lea.vmem %s0, %s31
  %s33 = sadd.s32 0, 0
  %s34 = smul.u32 2, %s33
  %p35 = scmp.lt.s32.totalorder %s34, 1
  %s36 = scalar_select %p35, %s34, 1
  %s37 = smul.addr %s36, 8
  %s38 = scalar_lea.vmem %s1, %s37
  %s39 = sadd.s32 0, 0
  %s40 = smul.u32 2, %s39
  %p41 = scmp.lt.s32.totalorder %s40, 1
  %s42 = scalar_select %p41, %s40, 1
  %s43 = smul.addr %s42, 8
  %s44 = scalar_lea.vmem %s0, %s43
  %s45 = sadd.s32 0, 0
  %s46 = smul.u32 2, %s45
  %s47 = sadd.s32 0, 0
  %s48 = smul.u32 2, %s47
  %p49 = scmp.lt.s32.totalorder %s48, 1
  %s50 = scalar_select %p49, %s48, 1
  %s51 = smul.addr %s50, 8
  %s52 = scalar_lea.vmem %s1, %s51
  %s53 = sadd.s32 0, 0
  %s54 = smul.u32 2, %s53
  %p55 = scmp.eq.s32.totalorder 0, 0
  // Predicated region
  $region10: #{_perceptual_loss.1} parent=0 // pred_check
    %p56 = pneg %p55
  $region11: #{_perceptual_loss.1} parent=0 // pred_check_branch
    %58 = sbr.rel (%p56) target = $region13
  $region12: #{_perceptual_loss.1} parent=0 // pred_region
    %59 = vst [vmem:[%s2] sm:$0xff] 0.0
  $region13: #{_perceptual_loss.1} parent=0 // pred_fallthru
    _
  %v60 = vld [vmem:[%s44] sm:$0xff]
  %v61 = vld [vmem:[%s44 + $0x8] sm:$0xff]
  %v62 = vld [vmem:[%s52] sm:$0xff]
  %v63 = vld [vmem:[%s52 + $0x8] sm:$0xff]
  %v64 = vsub.f32 %v60, %v62
  %v65 = vsub.f32 %v61, %v63
  %v66 = vmul.f32 %v64, %v64
  %v67 = vmul.f32 %v65, %v65
  %v68 = vadd.f32 %v66, %v67
  %v69 = vld [vmem:[%s2] sm:$0xff]
  %v70 = vadd.f32 %v69, %v68
  %71 = vst [vmem:[%s2] sm:$0xff] %v70
  // Predicated region
  $region14: #{_perceptual_loss.1} parent=0 // pred_check
    %p72 = pneg %p55
  $region15: #{_perceptual_loss.1} parent=0 // pred_check_branch
    %74 = sbr.rel (%p72) target = $region17
  $region16: #{_perceptual_loss.1} parent=0 // pred_region
    %v75 = vld [vmem:[%s2] sm:$0xff]
    %v76 = vmul.f32 %v75, 0.00048828125
    %77 = vst [vmem:[%s2] sm:$0xff] %v76
  $region17: #{_perceptual_loss.1} parent=0 // pred_fallthru
    _
  // Predicated region
  $region18: #{_perceptual_loss.1} parent=0 // pred_check
    _
  $region19: #{_perceptual_loss.1} parent=0 // pred_check_branch
    %79 = sbr.rel (0) target = $region21
  $region20: #{_perceptual_loss.1} parent=0 // pred_region
    _
  $region21: #{_perceptual_loss.1} parent=0 // pred_fallthru
    _
  // Predicated region
  $region22: #{_perceptual_loss.1} parent=0 // pred_check
    _
  $region23: #{_perceptual_loss.1} parent=0 // pred_check_branch
    %81 = sbr.rel (0) target = $region25
  $region24: #{_perceptual_loss.1} parent=0 // pred_region
    _
  $region25: #{_perceptual_loss.1} parent=0 // pred_fallthru
    _

</llo_original>
